<compile_context>
chip_gen: v7x
topology: tpu7x:2x2x1
jax: 0.10.0
libtpu: 0.0.40
codegen_flags: <defaults>
</compile_context>

<pallas_src>
import functools

import jax
import jax.numpy as jnp
from jax.experimental import pallas as pl
from jax.experimental.pallas import tpu as pltpu

EPS = 1e-5

# Row layout of the packed small-vector array (16, 128):
#   0: gamma1 (64)   1: beta1 (64)
#   2: gamma2 (128)  3: beta2 (128)
#   4: gamma3 (64)   5: beta3 (64)
#   6: gamma4 (32)   7: beta4 (32)
#   8: w5 row (32)   9: b5 (scalar at [9, 0])


def _bn_relu(h_f32, gamma, beta, inv_b, compute_dtype):
    """Fused training-mode BatchNorm1d + affine + ReLU on a (B, N) tile.

    Statistics (sum, sum-of-squares, mean, var, scale, shift) are kept in f32;
    the normalize + ReLU FMA runs in `compute_dtype` (bf16 on v6e/v7x, f32 on
    v5e). Always returns bf16, ready to feed the next MXU matmul directly.
    """
    s = jnp.sum(h_f32, axis=0, keepdims=True)
    ss = jnp.sum(h_f32 * h_f32, axis=0, keepdims=True)
    mean = s * inv_b
    var = jnp.maximum(ss * inv_b - mean * mean, 0.0)     # biased var, clamp >= 0
    scale = gamma * jax.lax.rsqrt(var + EPS)             # rsqrt -> EUP slot
    shift = beta - mean * scale
    h = h_f32.astype(compute_dtype)
    act = jnp.maximum(h * scale.astype(compute_dtype) + shift.astype(compute_dtype),
                      0.0)
    return act.astype(jnp.bfloat16)                      # no-op when already bf16


def mlp_kernel(x_ref, w1_ref, w2_ref, w3_ref, w4_ref, vec_ref, out_ref, *,
               compute_dtype):
    inv_b = 1.0 / x_ref.shape[0]

    x = x_ref[...]                                       # bf16 (pre-cast in wrapper)

    # Layer 1: (B,F) @ (F,64) -> BN -> ReLU
    h = jnp.dot(x, w1_ref[...], preferred_element_type=jnp.float32)
    h = _bn_relu(h, vec_ref[0:1, 0:64], vec_ref[1:2, 0:64], inv_b, compute_dtype)

    # Layer 2: (B,64) @ (64,128)
    h = jnp.dot(h, w2_ref[...], preferred_element_type=jnp.float32)
    h = _bn_relu(h, vec_ref[2:3, 0:128], vec_ref[3:4, 0:128], inv_b, compute_dtype)

    # Layer 3: (B,128) @ (128,64)
    h = jnp.dot(h, w3_ref[...], preferred_element_type=jnp.float32)
    h = _bn_relu(h, vec_ref[4:5, 0:64], vec_ref[5:6, 0:64], inv_b, compute_dtype)

    # Layer 4: (B,64) @ (64,32)
    h = jnp.dot(h, w4_ref[...], preferred_element_type=jnp.float32)
    h = _bn_relu(h, vec_ref[6:7, 0:32], vec_ref[7:8, 0:32], inv_b, compute_dtype)

    # Layer 5: out[0, b] = sum_k w5[k] * h[b, k] + b5, then ReLU.
    # Done as (1,32) x (B,32)^T so the batch lands on lanes -> lane-dense (1, B)
    # output (dense, unmasked stores and a contiguous HBM writeback).
    w5 = vec_ref[8:9, 0:32].astype(jnp.bfloat16)         # (1, 32)
    b5 = vec_ref[9:10, 0:1]                              # (1, 1) f32
    out_row = jax.lax.dot_general(
        w5, h, dimension_numbers=(((1,), (1,)), ((), ())),
        preferred_element_type=jnp.float32)              # (1, B) f32
    out_ref[...] = jnp.maximum(out_row + b5, 0.0)


def _vmem_limit_bytes() -> int:
    """~7/8 of physical VMEM (112 MiB on v5e/v6e, 56 MiB on v7x); safe fallback."""
    try:
        cap = getattr(pltpu.get_tpu_info(), "vmem_capacity_bytes", None)
    except Exception:
        cap = None
    if not cap:
        return 56 * 1024 * 1024
    return int(cap) * 7 // 8


def _bf16_valu_ok() -> bool:
    """bf16 elementwise math helps on v6e/v7x; keep it in f32 on v5 and older."""
    try:
        kind = jax.devices()[0].device_kind.lower()
    except Exception:
        return True
    return not any(tag in kind for tag in ("v2", "v3", "v4", "v5"))


def init_params(key, input_size):
    """Deterministic init mimicking nn.Linear defaults (uniform +/- 1/sqrt(fan_in))
    and nn.BatchNorm1d defaults (gamma=1, beta=0).

    Returns [w1_bf16, w2_bf16, w3_bf16, w4_bf16, packed_vec_f32(16,128)].
    Biases b1..b4 are intentionally not materialized (cancelled by training-mode BN).
    """
    dims = [input_size, 64, 128, 64, 32, 1]
    gb_rows = [(0, 1), (2, 3), (4, 5), (6, 7)]
    ws = []
    vec = jnp.zeros((16, 128), jnp.float32)
    for i in range(5):
        fan_in, fan_out = dims[i], dims[i + 1]
        key, kw, kb = jax.random.split(key, 3)
        bound = 1.0 / (fan_in ** 0.5)
        # Stored as (in, out): already transposed vs. PyTorch's (out, in).
        w = jax.random.uniform(kw, (fan_in, fan_out), jnp.float32, -bound, bound)
        b = jax.random.uniform(kb, (fan_out,), jnp.float32, -bound, bound)
        if i < 4:
            ws.append(w.astype(jnp.bfloat16))
            g_row, b_row = gb_rows[i]
            vec = vec.at[g_row, :fan_out].set(jnp.ones((fan_out,), jnp.float32))
            vec = vec.at[b_row, :fan_out].set(jnp.zeros((fan_out,), jnp.float32))
            # Linear bias for layers 1-4 dropped (exact: BN mean subtraction cancels it).
        else:
            vec = vec.at[8, :fan_in].set(w[:, 0])        # w5 as a lane row (32,)
            vec = vec.at[9, 0].set(b[0])                 # b5 scalar
    return ws + [vec]


def supervised_network(x, params):
    """x: (B, input_size) -> (B, 1) float32 (training-mode BN over the whole batch)."""
    # TODO(synk): very large B needs a batch-tiled two-pass design (pass 1: tiled
    # matmul + global sum/sumsq accumulation; pass 2: tiled normalize+ReLU) and,
    # on v7x, a 2-TensorCore batch split with a cross-core reduce of the tiny
    # per-layer stat vectors. The kernel never updates BN running stats (not a
    # drop-in for eval-mode BatchNorm1d).
    w1, w2, w3, w4, vec = params
    B, F = x.shape
    compute_dtype = jnp.bfloat16 if _bf16_valu_ok() else jnp.float32

    flops = 2 * B * (F * 64 + 64 * 128 + 128 * 64 + 64 * 32 + 32 * 1)
    bytes_accessed = (B * F * 2 + B * 4                              # x (bf16) + out (f32)
                      + (F * 64 + 64 * 128 + 128 * 64 + 64 * 32) * 2  # w1..w4 bf16
                      + 16 * 128 * 4)                                # packed vec f32
    cost = pl.CostEstimate(flops=flops,
                           transcendentals=64 + 128 + 64 + 32,       # 4 rsqrt rows
                           bytes_accessed=bytes_accessed)

    out_row = pl.pallas_call(
        functools.partial(mlp_kernel, compute_dtype=compute_dtype),
        out_shape=jax.ShapeDtypeStruct((1, B), jnp.float32),         # lane-dense row
        in_specs=[pl.BlockSpec(memory_space=pltpu.MemorySpace.VMEM)] * 6,
        out_specs=pl.BlockSpec(memory_space=pltpu.MemorySpace.VMEM),
        compiler_params=pltpu.CompilerParams(vmem_limit_bytes=_vmem_limit_bytes()),
        cost_estimate=cost,
    )(x.astype(jnp.bfloat16), w1, w2, w3, w4, vec)
    return out_row.reshape(B, 1)


if __name__ == "__main__":
    key = jax.random.PRNGKey(0)
    k_x, k_p = jax.random.split(key)

    batch = 8
    input_size = 16
    x = jax.random.normal(k_x, (batch, input_size), jnp.float32)

    params = init_params(k_p, input_size)

    out = supervised_network(x, params)
    jax.block_until_ready(out)

    assert out.shape == (batch, 1), out.shape
    assert out.dtype == jnp.float32
    print("KERNEL_OK")
</pallas_src>

<mosaic_0001>
module attributes {stable_mosaic.version = 11 : i64} {
  func.func @mlp_kernel(%arg0: memref<8x16xbf16, #tpu.memory_space<vmem>>, %arg1: memref<16x64xbf16, #tpu.memory_space<vmem>>, %arg2: memref<64x128xbf16, #tpu.memory_space<vmem>>, %arg3: memref<128x64xbf16, #tpu.memory_space<vmem>>, %arg4: memref<64x32xbf16, #tpu.memory_space<vmem>>, %arg5: memref<16x128xf32, #tpu.memory_space<vmem>>, %arg6: memref<1x8xf32, #tpu.memory_space<vmem>>) attributes {dimension_semantics = [], scalar_prefetch = 0 : i64, scratch_operands = 0 : i64, tpu.core_type = #tpu.core_type<tc>} {
    %c0 = arith.constant 0 : index
    %c0_0 = arith.constant 0 : index
    %0 = vector.load %arg0[%c0, %c0_0] : memref<8x16xbf16, #tpu.memory_space<vmem>>, vector<8x16xbf16>
    %c0_1 = arith.constant 0 : index
    %c0_2 = arith.constant 0 : index
    %1 = vector.load %arg1[%c0_1, %c0_2] : memref<16x64xbf16, #tpu.memory_space<vmem>>, vector<16x64xbf16>
    %cst = arith.constant dense<0.000000e+00> : vector<8x64xf32>
    %2 = tpu.matmul %0, %1, %cst {dimension_numbers = #tpu.dot_dimension_numbers<[1], [0], [0], [1], [0, 0, 1, 1], [], []>} : vector<8x16xbf16>, vector<16x64xbf16>, vector<8x64xf32> -> vector<8x64xf32>
    %c0_3 = arith.constant 0 : index
    %c0_4 = arith.constant 0 : index
    %3 = vector.load %arg5[%c0_3, %c0_4] : memref<16x128xf32, #tpu.memory_space<vmem>>, vector<1x64xf32>
    %c1 = arith.constant 1 : index
    %c0_5 = arith.constant 0 : index
    %4 = vector.load %arg5[%c1, %c0_5] : memref<16x128xf32, #tpu.memory_space<vmem>>, vector<1x64xf32>
    %cst_6 = arith.constant dense<0.000000e+00> : vector<64xf32>
    %5 = vector.multi_reduction <add>, %2, %cst_6 [0] : vector<8x64xf32> to vector<64xf32>
    %6 = vector.shape_cast %5 : vector<64xf32> to vector<1x64xf32>
    %7 = arith.mulf %2, %2 : vector<8x64xf32>
    %cst_7 = arith.constant dense<0.000000e+00> : vector<64xf32>
    %8 = vector.multi_reduction <add>, %7, %cst_7 [0] : vector<8x64xf32> to vector<64xf32>
    %9 = vector.shape_cast %8 : vector<64xf32> to vector<1x64xf32>
    %cst_8 = arith.constant 1.250000e-01 : f32
    %10 = vector.broadcast %cst_8 : f32 to vector<1x64xf32>
    %11 = arith.mulf %6, %10 : vector<1x64xf32>
    %cst_9 = arith.constant 1.250000e-01 : f32
    %12 = vector.broadcast %cst_9 : f32 to vector<1x64xf32>
    %13 = arith.mulf %9, %12 : vector<1x64xf32>
    %14 = arith.mulf %11, %11 : vector<1x64xf32>
    %15 = arith.subf %13, %14 : vector<1x64xf32>
    %cst_10 = arith.constant 0.000000e+00 : f32
    %16 = vector.broadcast %cst_10 : f32 to vector<1x64xf32>
    %17 = arith.maximumf %15, %16 : vector<1x64xf32>
    %cst_11 = arith.constant 9.99999974E-6 : f32
    %18 = vector.broadcast %cst_11 : f32 to vector<1x64xf32>
    %19 = arith.addf %17, %18 : vector<1x64xf32>
    %20 = math.rsqrt %19 : vector<1x64xf32>
    %21 = arith.mulf %3, %20 : vector<1x64xf32>
    %22 = arith.mulf %11, %21 : vector<1x64xf32>
    %23 = arith.subf %4, %22 : vector<1x64xf32>
    %24 = arith.truncf %2 : vector<8x64xf32> to vector<8x64xbf16>
    %25 = arith.truncf %21 : vector<1x64xf32> to vector<1x64xbf16>
    %26 = vector.broadcast %25 : vector<1x64xbf16> to vector<8x64xbf16>
    %27 = arith.mulf %24, %26 : vector<8x64xbf16>
    %28 = arith.truncf %23 : vector<1x64xf32> to vector<1x64xbf16>
    %29 = vector.broadcast %28 : vector<1x64xbf16> to vector<8x64xbf16>
    %30 = arith.addf %27, %29 : vector<8x64xbf16>
    %cst_12 = arith.constant 0.000000e+00 : bf16
    %31 = vector.broadcast %cst_12 : bf16 to vector<8x64xbf16>
    %32 = arith.maximumf %30, %31 : vector<8x64xbf16>
    %c0_13 = arith.constant 0 : index
    %c0_14 = arith.constant 0 : index
    %33 = vector.load %arg2[%c0_13, %c0_14] : memref<64x128xbf16, #tpu.memory_space<vmem>>, vector<64x128xbf16>
    %cst_15 = arith.constant dense<0.000000e+00> : vector<8x128xf32>
    %34 = tpu.matmul %32, %33, %cst_15 {dimension_numbers = #tpu.dot_dimension_numbers<[1], [0], [0], [1], [0, 0, 1, 1], [], []>} : vector<8x64xbf16>, vector<64x128xbf16>, vector<8x128xf32> -> vector<8x128xf32>
    %c2 = arith.constant 2 : index
    %c0_16 = arith.constant 0 : index
    %35 = vector.load %arg5[%c2, %c0_16] : memref<16x128xf32, #tpu.memory_space<vmem>>, vector<1x128xf32>
    %c3 = arith.constant 3 : index
    %c0_17 = arith.constant 0 : index
    %36 = vector.load %arg5[%c3, %c0_17] : memref<16x128xf32, #tpu.memory_space<vmem>>, vector<1x128xf32>
    %cst_18 = arith.constant dense<0.000000e+00> : vector<128xf32>
    %37 = vector.multi_reduction <add>, %34, %cst_18 [0] : vector<8x128xf32> to vector<128xf32>
    %38 = vector.shape_cast %37 : vector<128xf32> to vector<1x128xf32>
    %39 = arith.mulf %34, %34 : vector<8x128xf32>
    %cst_19 = arith.constant dense<0.000000e+00> : vector<128xf32>
    %40 = vector.multi_reduction <add>, %39, %cst_19 [0] : vector<8x128xf32> to vector<128xf32>
    %41 = vector.shape_cast %40 : vector<128xf32> to vector<1x128xf32>
    %cst_20 = arith.constant 1.250000e-01 : f32
    %42 = vector.broadcast %cst_20 : f32 to vector<1x128xf32>
    %43 = arith.mulf %38, %42 : vector<1x128xf32>
    %cst_21 = arith.constant 1.250000e-01 : f32
    %44 = vector.broadcast %cst_21 : f32 to vector<1x128xf32>
    %45 = arith.mulf %41, %44 : vector<1x128xf32>
    %46 = arith.mulf %43, %43 : vector<1x128xf32>
    %47 = arith.subf %45, %46 : vector<1x128xf32>
    %cst_22 = arith.constant 0.000000e+00 : f32
    %48 = vector.broadcast %cst_22 : f32 to vector<1x128xf32>
    %49 = arith.maximumf %47, %48 : vector<1x128xf32>
    %cst_23 = arith.constant 9.99999974E-6 : f32
    %50 = vector.broadcast %cst_23 : f32 to vector<1x128xf32>
    %51 = arith.addf %49, %50 : vector<1x128xf32>
    %52 = math.rsqrt %51 : vector<1x128xf32>
    %53 = arith.mulf %35, %52 : vector<1x128xf32>
    %54 = arith.mulf %43, %53 : vector<1x128xf32>
    %55 = arith.subf %36, %54 : vector<1x128xf32>
    %56 = arith.truncf %34 : vector<8x128xf32> to vector<8x128xbf16>
    %57 = arith.truncf %53 : vector<1x128xf32> to vector<1x128xbf16>
    %58 = vector.broadcast %57 : vector<1x128xbf16> to vector<8x128xbf16>
    %59 = arith.mulf %56, %58 : vector<8x128xbf16>
    %60 = arith.truncf %55 : vector<1x128xf32> to vector<1x128xbf16>
    %61 = vector.broadcast %60 : vector<1x128xbf16> to vector<8x128xbf16>
    %62 = arith.addf %59, %61 : vector<8x128xbf16>
    %cst_24 = arith.constant 0.000000e+00 : bf16
    %63 = vector.broadcast %cst_24 : bf16 to vector<8x128xbf16>
    %64 = arith.maximumf %62, %63 : vector<8x128xbf16>
    %c0_25 = arith.constant 0 : index
    %c0_26 = arith.constant 0 : index
    %65 = vector.load %arg3[%c0_25, %c0_26] : memref<128x64xbf16, #tpu.memory_space<vmem>>, vector<128x64xbf16>
    %cst_27 = arith.constant dense<0.000000e+00> : vector<8x64xf32>
    %66 = tpu.matmul %64, %65, %cst_27 {dimension_numbers = #tpu.dot_dimension_numbers<[1], [0], [0], [1], [0, 0, 1, 1], [], []>} : vector<8x128xbf16>, vector<128x64xbf16>, vector<8x64xf32> -> vector<8x64xf32>
    %c4 = arith.constant 4 : index
    %c0_28 = arith.constant 0 : index
    %67 = vector.load %arg5[%c4, %c0_28] : memref<16x128xf32, #tpu.memory_space<vmem>>, vector<1x64xf32>
    %c5 = arith.constant 5 : index
    %c0_29 = arith.constant 0 : index
    %68 = vector.load %arg5[%c5, %c0_29] : memref<16x128xf32, #tpu.memory_space<vmem>>, vector<1x64xf32>
    %cst_30 = arith.constant dense<0.000000e+00> : vector<64xf32>
    %69 = vector.multi_reduction <add>, %66, %cst_30 [0] : vector<8x64xf32> to vector<64xf32>
    %70 = vector.shape_cast %69 : vector<64xf32> to vector<1x64xf32>
    %71 = arith.mulf %66, %66 : vector<8x64xf32>
    %cst_31 = arith.constant dense<0.000000e+00> : vector<64xf32>
    %72 = vector.multi_reduction <add>, %71, %cst_31 [0] : vector<8x64xf32> to vector<64xf32>
    %73 = vector.shape_cast %72 : vector<64xf32> to vector<1x64xf32>
    %cst_32 = arith.constant 1.250000e-01 : f32
    %74 = vector.broadcast %cst_32 : f32 to vector<1x64xf32>
    %75 = arith.mulf %70, %74 : vector<1x64xf32>
    %cst_33 = arith.constant 1.250000e-01 : f32
    %76 = vector.broadcast %cst_33 : f32 to vector<1x64xf32>
    %77 = arith.mulf %73, %76 : vector<1x64xf32>
    %78 = arith.mulf %75, %75 : vector<1x64xf32>
    %79 = arith.subf %77, %78 : vector<1x64xf32>
    %cst_34 = arith.constant 0.000000e+00 : f32
    %80 = vector.broadcast %cst_34 : f32 to vector<1x64xf32>
    %81 = arith.maximumf %79, %80 : vector<1x64xf32>
    %cst_35 = arith.constant 9.99999974E-6 : f32
    %82 = vector.broadcast %cst_35 : f32 to vector<1x64xf32>
    %83 = arith.addf %81, %82 : vector<1x64xf32>
    %84 = math.rsqrt %83 : vector<1x64xf32>
    %85 = arith.mulf %67, %84 : vector<1x64xf32>
    %86 = arith.mulf %75, %85 : vector<1x64xf32>
    %87 = arith.subf %68, %86 : vector<1x64xf32>
    %88 = arith.truncf %66 : vector<8x64xf32> to vector<8x64xbf16>
    %89 = arith.truncf %85 : vector<1x64xf32> to vector<1x64xbf16>
    %90 = vector.broadcast %89 : vector<1x64xbf16> to vector<8x64xbf16>
    %91 = arith.mulf %88, %90 : vector<8x64xbf16>
    %92 = arith.truncf %87 : vector<1x64xf32> to vector<1x64xbf16>
    %93 = vector.broadcast %92 : vector<1x64xbf16> to vector<8x64xbf16>
    %94 = arith.addf %91, %93 : vector<8x64xbf16>
    %cst_36 = arith.constant 0.000000e+00 : bf16
    %95 = vector.broadcast %cst_36 : bf16 to vector<8x64xbf16>
    %96 = arith.maximumf %94, %95 : vector<8x64xbf16>
    %c0_37 = arith.constant 0 : index
    %c0_38 = arith.constant 0 : index
    %97 = vector.load %arg4[%c0_37, %c0_38] : memref<64x32xbf16, #tpu.memory_space<vmem>>, vector<64x32xbf16>
    %cst_39 = arith.constant dense<0.000000e+00> : vector<8x32xf32>
    %98 = tpu.matmul %96, %97, %cst_39 {dimension_numbers = #tpu.dot_dimension_numbers<[1], [0], [0], [1], [0, 0, 1, 1], [], []>} : vector<8x64xbf16>, vector<64x32xbf16>, vector<8x32xf32> -> vector<8x32xf32>
    %c6 = arith.constant 6 : index
    %c0_40 = arith.constant 0 : index
    %99 = vector.load %arg5[%c6, %c0_40] : memref<16x128xf32, #tpu.memory_space<vmem>>, vector<1x32xf32>
    %c7 = arith.constant 7 : index
    %c0_41 = arith.constant 0 : index
    %100 = vector.load %arg5[%c7, %c0_41] : memref<16x128xf32, #tpu.memory_space<vmem>>, vector<1x32xf32>
    %cst_42 = arith.constant dense<0.000000e+00> : vector<32xf32>
    %101 = vector.multi_reduction <add>, %98, %cst_42 [0] : vector<8x32xf32> to vector<32xf32>
    %102 = vector.shape_cast %101 : vector<32xf32> to vector<1x32xf32>
    %103 = arith.mulf %98, %98 : vector<8x32xf32>
    %cst_43 = arith.constant dense<0.000000e+00> : vector<32xf32>
    %104 = vector.multi_reduction <add>, %103, %cst_43 [0] : vector<8x32xf32> to vector<32xf32>
    %105 = vector.shape_cast %104 : vector<32xf32> to vector<1x32xf32>
    %cst_44 = arith.constant 1.250000e-01 : f32
    %106 = vector.broadcast %cst_44 : f32 to vector<1x32xf32>
    %107 = arith.mulf %102, %106 : vector<1x32xf32>
    %cst_45 = arith.constant 1.250000e-01 : f32
    %108 = vector.broadcast %cst_45 : f32 to vector<1x32xf32>
    %109 = arith.mulf %105, %108 : vector<1x32xf32>
    %110 = arith.mulf %107, %107 : vector<1x32xf32>
    %111 = arith.subf %109, %110 : vector<1x32xf32>
    %cst_46 = arith.constant 0.000000e+00 : f32
    %112 = vector.broadcast %cst_46 : f32 to vector<1x32xf32>
    %113 = arith.maximumf %111, %112 : vector<1x32xf32>
    %cst_47 = arith.constant 9.99999974E-6 : f32
    %114 = vector.broadcast %cst_47 : f32 to vector<1x32xf32>
    %115 = arith.addf %113, %114 : vector<1x32xf32>
    %116 = math.rsqrt %115 : vector<1x32xf32>
    %117 = arith.mulf %99, %116 : vector<1x32xf32>
    %118 = arith.mulf %107, %117 : vector<1x32xf32>
    %119 = arith.subf %100, %118 : vector<1x32xf32>
    %120 = arith.truncf %98 : vector<8x32xf32> to vector<8x32xbf16>
    %121 = arith.truncf %117 : vector<1x32xf32> to vector<1x32xbf16>
    %122 = vector.broadcast %121 : vector<1x32xbf16> to vector<8x32xbf16>
    %123 = arith.mulf %120, %122 : vector<8x32xbf16>
    %124 = arith.truncf %119 : vector<1x32xf32> to vector<1x32xbf16>
    %125 = vector.broadcast %124 : vector<1x32xbf16> to vector<8x32xbf16>
    %126 = arith.addf %123, %125 : vector<8x32xbf16>
    %cst_48 = arith.constant 0.000000e+00 : bf16
    %127 = vector.broadcast %cst_48 : bf16 to vector<8x32xbf16>
    %128 = arith.maximumf %126, %127 : vector<8x32xbf16>
    %c8 = arith.constant 8 : index
    %c0_49 = arith.constant 0 : index
    %129 = vector.load %arg5[%c8, %c0_49] : memref<16x128xf32, #tpu.memory_space<vmem>>, vector<1x32xf32>
    %130 = arith.truncf %129 : vector<1x32xf32> to vector<1x32xbf16>
    %c9 = arith.constant 9 : index
    %c0_50 = arith.constant 0 : index
    %131 = vector.load %arg5[%c9, %c0_50] : memref<16x128xf32, #tpu.memory_space<vmem>>, vector<1x1xf32>
    %cst_51 = arith.constant dense<0.000000e+00> : vector<1x8xf32>
    %132 = tpu.matmul %130, %128, %cst_51 {dimension_numbers = #tpu.dot_dimension_numbers<[1], [1], [0], [0], [0, 0, 1, 0], [], []>} : vector<1x32xbf16>, vector<8x32xbf16>, vector<1x8xf32> -> vector<1x8xf32>
    %133 = vector.broadcast %131 : vector<1x1xf32> to vector<1x8xf32>
    %134 = arith.addf %132, %133 : vector<1x8xf32>
    %cst_52 = arith.constant 0.000000e+00 : f32
    %135 = vector.broadcast %cst_52 : f32 to vector<1x8xf32>
    %136 = arith.maximumf %134, %135 : vector<1x8xf32>
    %c0_53 = arith.constant 0 : index
    %c0_54 = arith.constant 0 : index
    %137 = vector.load %arg6[%c0_53, %c0_54] : memref<1x8xf32, #tpu.memory_space<vmem>>, vector<1x8xf32>
    tpu.vector_store %arg6[%c0_53, %c0_54], %136 {strides = array<i32>} : memref<1x8xf32, #tpu.memory_space<vmem>>, vector<1x8xf32>,
    return
  }
}

</mosaic_0001>

<llo_original>
// kernel: tpu_custom_call.1
$region0: #{tpu_custom_call.1}
  #allocation0 [shape = 'u32[]', space=smem, size = 0x4, offset = 0x4, fixed_abs, tag = 'smem constant byte address 0x4 - core index']
  #allocation1 [shape = 'u32[144,128]{1,0:T(1,128)}', space=vmem, size = 0x12000, scoped, tag = 'internal scratch']
  %s0 = inlined_call_operand.vmem [shape: bf16[8,16], index: 0, kind: input, shape index: {}]
  %s1 = inlined_call_operand.vmem [shape: bf16[16,64], index: 1, kind: input, shape index: {}]
  %s2 = inlined_call_operand.vmem [shape: bf16[64,128], index: 2, kind: input, shape index: {}]
  %s3 = inlined_call_operand.vmem [shape: bf16[128,64], index: 3, kind: input, shape index: {}]
  %s4 = inlined_call_operand.vmem [shape: bf16[64,32], index: 4, kind: input, shape index: {}]
  %s5 = inlined_call_operand.vmem [shape: f32[16,128], index: 5, kind: input, shape index: {}]
  %s6 = inlined_call_operand.hbm [shape: f32[1,8], index: 6, kind: output, shape index: {}]
  %s7 = sld [smem:[#allocation0]]
  $region34: #{tpu_custom_call.1} parent=0
    _
  %s9 = ssub.s32 1, %s7
  %s10 = scalar_select 0, %s9, %s7
  $region1: #{tpu_custom_call.1} parent=0
    #allocation2 [shape = 'u8[512]{0}', space=vmem, size = 0x400, scoped, tag = 'output window, operand 0, single buffered']
    #allocation3 [shape = 's32[1]{0}', space=sflag, size = 0x4, scoped, tag = 'scoped memory for tpu_custom_call.1']
    %11 = vsyncpa [#allocation3], 0
    // Predicated region
    $region2: #{tpu_custom_call.1} parent=1 // pred_check
      _
    $region3: #{tpu_custom_call.1} parent=1 // pred_check_branch
      %13 = sbr.rel (0) target = $region5
    $region4: #{tpu_custom_call.1} parent=1 // pred_region
      _
    $region5: #{tpu_custom_call.1} parent=1 // pred_fallthru
      _
    // Predicated region
    $region6: #{tpu_custom_call.1} parent=1 // pred_check
      _
    $region7: #{tpu_custom_call.1} parent=1 // pred_check_branch
      %15 = sbr.rel (0) target = $region9
    $region8: #{tpu_custom_call.1} parent=1 // pred_region
      _
    $region9: #{tpu_custom_call.1} parent=1 // pred_fallthru
      _
    // Predicated region
    $region10: #{tpu_custom_call.1} parent=1 // pred_check
      _
    $region11: #{tpu_custom_call.1} parent=1 // pred_check_branch
      %17 = sbr.rel (0) target = $region13
    $region12: #{tpu_custom_call.1} parent=1 // pred_region
      _
    $region13: #{tpu_custom_call.1} parent=1 // pred_fallthru
      _
    // Predicated region
    $region14: #{tpu_custom_call.1} parent=1 // pred_check
      _
    $region15: #{tpu_custom_call.1} parent=1 // pred_check_branch
      %19 = sbr.rel (0) target = $region17
    $region16: #{tpu_custom_call.1} parent=1 // pred_region
      _
    $region17: #{tpu_custom_call.1} parent=1 // pred_fallthru
      _
    // Predicated region
    $region18: #{tpu_custom_call.1} parent=1 // pred_check
      _
    $region19: #{tpu_custom_call.1} parent=1 // pred_check_branch
      %21 = sbr.rel (0) target = $region21
    $region20: #{tpu_custom_call.1} parent=1 // pred_region
      _
    $region21: #{tpu_custom_call.1} parent=1 // pred_fallthru
      _
    // Predicated region
    $region22: #{tpu_custom_call.1} parent=1 // pred_check
      _
    $region23: #{tpu_custom_call.1} parent=1 // pred_check_branch
      %23 = sbr.rel (0) target = $region25
    $region24: #{tpu_custom_call.1} parent=1 // pred_region
      _
    $region25: #{tpu_custom_call.1} parent=1 // pred_fallthru
      _
    %v25 = vld [vmem:[%s0] sm:$0xf]
    %v26 = vld [vmem:[%s1] sm:$0xf]
    %v27 = vld [vmem:[%s1 + $0x4] sm:$0xf]
    %v30 = vunpack.c.l.b16 %v26
    %v31 = vunpack.c.l.b16 %v27
    %v32 = vpack.c.b16 %v31, %v30
    %vm34 = vcmask 130048
    %v36 = vsel %vm34, %v25, 0
    %38 = vmatprep.subr.bf16.mxu0 0
    %39 = vmatpush1.bf16.msra.mxu0 %v32
    %40 = vmatprep.subr.bf16.mxu0 0
    %41 = vmatpush1.bf16.msra.mxu0 0
    %42 = vmatprep.subr.bf16.mxu0 0
    %43 = vmatpush1.bf16.msra.mxu0 0
    %44 = vmatprep.subr.bf16.mxu0 0
    %45 = vmatpush1.bf16.msra.mxu0 0
    %46 = vmatprep.subr.bf16.mxu0 0
    %47 = vmatpush1.bf16.msra.mxu0 0
    %48 = vmatprep.subr.bf16.mxu0 0
    %49 = vmatpush1.bf16.msra.mxu0 0
    %50 = vmatprep.subr.bf16.mxu0 0
    %51 = vmatpush1.bf16.msra.mxu0 0
    %52 = vmatprep.subr.bf16.mxu0 0
    %53 = vmatpush1.bf16.msra.mxu0 0
    %54 = vmatprep.subr.bf16.mxu0 0
    %55 = vmatpush1.bf16.msra.mxu0 0
    %56 = vmatprep.subr.bf16.mxu0 0
    %57 = vmatpush1.bf16.msra.mxu0 0
    %58 = vmatprep.subr.bf16.mxu0 0
    %59 = vmatpush1.bf16.msra.mxu0 0
    %60 = vmatprep.subr.bf16.mxu0 0
    %61 = vmatpush1.bf16.msra.mxu0 0
    %62 = vmatprep.subr.bf16.mxu0 0
    %63 = vmatpush1.bf16.msra.mxu0 0
    %64 = vmatprep.subr.bf16.mxu0 0
    %65 = vmatpush1.bf16.msra.mxu0 0
    %66 = vmatprep.subr.bf16.mxu0 0
    %67 = vmatpush1.bf16.msra.mxu0 0
    %68 = vmatprep.subr.bf16.mxu0 0
    %69 = vmatpush1.bf16.msra.mxu0 0
    %70 = vmatprep.mubr.bf16.mxu0 0
    %71 = vmatmul.mubr.bf16.gmra.mrb[0].mxu0 %v36
    %v72 = vpop.f32.mrb[0].mxu0
    %v73 = vadd.f32 0.0, %v72
    %v74 = vpop.f32.mrb[0].mxu0
    %v75 = vpop.f32.mrb[0].mxu0
    %v76 = vpop.f32.mrb[0].mxu0
    %77 = vdwg.mxu0
    %v78 = vld [vmem:[%s5] sm:$0x1]
    %v79 = vld [vmem:[%s5 + $0x1] sm:$0x1]
    %vm80 = vcmask 523264
    %v81 = vsel %vm80, %v73, 0.0
    %v82 = vrot.slane %v81, 4
    %v83 = vadd.f32 %v81, %v82
    %v84 = vrot.slane %v83, 2
    %v85 = vadd.f32 %v83, %v84
    %v86 = vrot.slane %v85, 1
    %v87 = vadd.f32 %v85, %v86
    %v88 = vmul.f32 %v73, %v73
    %v89 = vsel %vm80, %v88, 0.0
    %v90 = vrot.slane %v89, 4
    %v91 = vadd.f32 %v89, %v90
    %v92 = vrot.slane %v91, 2
    %v93 = vadd.f32 %v91, %v92
    %v94 = vrot.slane %v93, 1
    %v95 = vadd.f32 %v93, %v94
    %v96 = vmul.f32 %v87, 0.125
    %v97 = vmul.f32 %v95, 0.125
    %v98 = vmul.f32 %v96, %v96
    %v99 = vsub.f32 %v97, %v98
    %v100 = vmax.f32 %v99, 0.0
    %v101 = vadd.f32 %v100, 1e-05
    %v102 = vrsqrt.pop %v101
    %v103 = vmul.f32 %v78, %v102
    %v104 = vmul.f32 %v96, %v103
    %v105 = vsub.f32 %v79, %v104
    %v106 = vpack.c.bf16 %v73, %v73
    %v107 = vpack.c.bf16 %v103, %v103
    %v109 = vpack.i.b16 %v107, %v107
    %v111 = vlaneseq
    %v112 = vshrl.u32 %v111, 7
    %v113 = vsub.s32 0, %v112
    %v114 = vrot.slane %v109, %v113
    %v115 = vmul.bf16 %v106, %v114
    %v116 = vpack.c.bf16 %v105, %v105
    %v118 = vpack.i.b16 %v116, %v116
    %v120 = vlaneseq
    %v121 = vshrl.u32 %v120, 7
    %v122 = vsub.s32 0, %v121
    %v123 = vrot.slane %v118, %v122
    %v124 = vadd.bf16 %v115, %v123
    %v125 = vmax.bf16 %v124, 0
    %v126 = vld [vmem:[%s2] sm:$0xf]
    %v127 = vld [vmem:[%s2 + $0x4] sm:$0xf]
    %v128 = vld [vmem:[%s2 + $0x8] sm:$0xf]
    %v129 = vld [vmem:[%s2 + $0xc] sm:$0xf]
    %v130 = vld [vmem:[%s2 + $0x10] sm:$0xf]
    %v131 = vld [vmem:[%s2 + $0x14] sm:$0xf]
    %v132 = vld [vmem:[%s2 + $0x18] sm:$0xf]
    %v133 = vld [vmem:[%s2 + $0x1c] sm:$0xf]
    %v142 = vunpack.c.l.b16 %v126
    %v143 = vunpack.c.l.b16 %v127
    %v144 = vunpack.c.l.b16 %v128
    %v145 = vunpack.c.l.b16 %v129
    %v146 = vunpack.c.l.b16 %v130
    %v147 = vunpack.c.l.b16 %v131
    %v148 = vunpack.c.l.b16 %v132
    %v149 = vunpack.c.l.b16 %v133
    %v150 = vpack.c.b16 %v143, %v142
    %v151 = vpack.c.b16 %v145, %v144
    %v152 = vpack.c.b16 %v147, %v146
    %v153 = vpack.c.b16 %v149, %v148
    %v159 = vsel %vm80, %v125, 0
    %161 = vmatprep.subr.bf16.mxu0 0
    %162 = vmatpush1.bf16.msra.mxu0 %v150
    %163 = vmatprep.subr.bf16.mxu0 0
    %164 = vmatpush1.bf16.msra.mxu0 %v151
    %165 = vmatprep.subr.bf16.mxu0 0
    %166 = vmatpush1.bf16.msra.mxu0 %v152
    %167 = vmatprep.subr.bf16.mxu0 0
    %168 = vmatpush1.bf16.msra.mxu0 %v153
    %169 = vmatprep.subr.bf16.mxu0 0
    %170 = vmatpush1.bf16.msra.mxu0 0
    %171 = vmatprep.subr.bf16.mxu0 0
    %172 = vmatpush1.bf16.msra.mxu0 0
    %173 = vmatprep.subr.bf16.mxu0 0
    %174 = vmatpush1.bf16.msra.mxu0 0
    %175 = vmatprep.subr.bf16.mxu0 0
    %176 = vmatpush1.bf16.msra.mxu0 0
    %177 = vmatprep.subr.bf16.mxu0 0
    %178 = vmatpush1.bf16.msra.mxu0 0
    %179 = vmatprep.subr.bf16.mxu0 0
    %180 = vmatpush1.bf16.msra.mxu0 0
    %181 = vmatprep.subr.bf16.mxu0 0
    %182 = vmatpush1.bf16.msra.mxu0 0
    %183 = vmatprep.subr.bf16.mxu0 0
    %184 = vmatpush1.bf16.msra.mxu0 0
    %185 = vmatprep.subr.bf16.mxu0 0
    %186 = vmatpush1.bf16.msra.mxu0 0
    %187 = vmatprep.subr.bf16.mxu0 0
    %188 = vmatpush1.bf16.msra.mxu0 0
    %189 = vmatprep.subr.bf16.mxu0 0
    %190 = vmatpush1.bf16.msra.mxu0 0
    %191 = vmatprep.subr.bf16.mxu0 0
    %192 = vmatpush1.bf16.msra.mxu0 0
    %193 = vmatprep.mubr.bf16.mxu0 0
    %194 = vmatmul.mubr.bf16.gmra.mrb[0].mxu0 %v159
    %v195 = vpop.f32.mrb[0].mxu0
    %v196 = vadd.f32 0.0, %v195
    %v197 = vpop.f32.mrb[0].mxu0
    %v198 = vpop.f32.mrb[0].mxu0
    %v199 = vpop.f32.mrb[0].mxu0
    %200 = vdwg.mxu0
    %v201 = vld [vmem:[%s5 + $0x2] sm:$0x1]
    %v202 = vld [vmem:[%s5 + $0x3] sm:$0x1]
    %v203 = vrot.slane %v196, 4
    %v204 = vadd.f32 %v196, %v203
    %v205 = vrot.slane %v204, 2
    %v206 = vadd.f32 %v204, %v205
    %v207 = vrot.slane %v206, 1
    %v208 = vadd.f32 %v206, %v207
    %v209 = vmul.f32 %v196, %v196
    %v210 = vrot.slane %v209, 4
    %v211 = vadd.f32 %v209, %v210
    %v212 = vrot.slane %v211, 2
    %v213 = vadd.f32 %v211, %v212
    %v214 = vrot.slane %v213, 1
    %v215 = vadd.f32 %v213, %v214
    %v216 = vmul.f32 %v208, 0.125
    %v217 = vmul.f32 %v215, 0.125
    %v218 = vmul.f32 %v216, %v216
    %v219 = vsub.f32 %v217, %v218
    %v220 = vmax.f32 %v219, 0.0
    %v221 = vadd.f32 %v220, 1e-05
    %v222 = vrsqrt.pop %v221
    %v223 = vmul.f32 %v201, %v222
    %v224 = vmul.f32 %v216, %v223
    %v225 = vsub.f32 %v202, %v224
    %v226 = vpack.c.bf16 %v196, %v196
    %v227 = vpack.c.bf16 %v223, %v223
    %v229 = vpack.i.b16 %v227, %v227
    %v231 = vlaneseq
    %v232 = vshrl.u32 %v231, 7
    %v233 = vsub.s32 0, %v232
    %v234 = vrot.slane %v229, %v233
    %v235 = vmul.bf16 %v226, %v234
    %v236 = vpack.c.bf16 %v225, %v225
    %v238 = vpack.i.b16 %v236, %v236
    %v240 = vlaneseq
    %v241 = vshrl.u32 %v240, 7
    %v242 = vsub.s32 0, %v241
    %v243 = vrot.slane %v238, %v242
    %v244 = vadd.bf16 %v235, %v243
    %v245 = vmax.bf16 %v244, 0
    %v246 = vld [vmem:[%s3] sm:$0xf]
    %v247 = vld [vmem:[%s3 + $0x4] sm:$0xf]
    %v248 = vld [vmem:[%s3 + $0x8] sm:$0xf]
    %v249 = vld [vmem:[%s3 + $0xc] sm:$0xf]
    %v250 = vld [vmem:[%s3 + $0x10] sm:$0xf]
    %v251 = vld [vmem:[%s3 + $0x14] sm:$0xf]
    %v252 = vld [vmem:[%s3 + $0x18] sm:$0xf]
    %v253 = vld [vmem:[%s3 + $0x1c] sm:$0xf]
    %v254 = vld [vmem:[%s3 + $0x20] sm:$0xf]
    %v255 = vld [vmem:[%s3 + $0x24] sm:$0xf]
    %v256 = vld [vmem:[%s3 + $0x28] sm:$0xf]
    %v257 = vld [vmem:[%s3 + $0x2c] sm:$0xf]
    %v258 = vld [vmem:[%s3 + $0x30] sm:$0xf]
    %v259 = vld [vmem:[%s3 + $0x34] sm:$0xf]
    %v260 = vld [vmem:[%s3 + $0x38] sm:$0xf]
    %v261 = vld [vmem:[%s3 + $0x3c] sm:$0xf]
    %v278 = vunpack.c.l.b16 %v246
    %v279 = vunpack.c.l.b16 %v247
    %v280 = vunpack.c.l.b16 %v248
    %v281 = vunpack.c.l.b16 %v249
    %v282 = vunpack.c.l.b16 %v250
    %v283 = vunpack.c.l.b16 %v251
    %v284 = vunpack.c.l.b16 %v252
    %v285 = vunpack.c.l.b16 %v253
    %v286 = vunpack.c.l.b16 %v254
    %v287 = vunpack.c.l.b16 %v255
    %v288 = vunpack.c.l.b16 %v256
    %v289 = vunpack.c.l.b16 %v257
    %v290 = vunpack.c.l.b16 %v258
    %v291 = vunpack.c.l.b16 %v259
    %v292 = vunpack.c.l.b16 %v260
    %v293 = vunpack.c.l.b16 %v261
    %v294 = vpack.c.b16 %v279, %v278
    %v295 = vpack.c.b16 %v281, %v280
    %v296 = vpack.c.b16 %v283, %v282
    %v297 = vpack.c.b16 %v285, %v284
    %v298 = vpack.c.b16 %v287, %v286
    %v299 = vpack.c.b16 %v289, %v288
    %v300 = vpack.c.b16 %v291, %v290
    %v301 = vpack.c.b16 %v293, %v292
    %310 = vmatprep.subr.bf16.mxu0 0
    %311 = vmatpush1.bf16.msra.mxu0 %v294
    %312 = vmatprep.subr.bf16.mxu0 0
    %313 = vmatpush1.bf16.msra.mxu0 %v295
    %314 = vmatprep.subr.bf16.mxu0 0
    %315 = vmatpush1.bf16.msra.mxu0 %v296
    %316 = vmatprep.subr.bf16.mxu0 0
    %317 = vmatpush1.bf16.msra.mxu0 %v297
    %318 = vmatprep.subr.bf16.mxu0 0
    %319 = vmatpush1.bf16.msra.mxu0 %v298
    %320 = vmatprep.subr.bf16.mxu0 0
    %321 = vmatpush1.bf16.msra.mxu0 %v299
    %322 = vmatprep.subr.bf16.mxu0 0
    %323 = vmatpush1.bf16.msra.mxu0 %v300
    %324 = vmatprep.subr.bf16.mxu0 0
    %325 = vmatpush1.bf16.msra.mxu0 %v301
    %326 = vmatprep.subr.bf16.mxu0 0
    %327 = vmatpush1.bf16.msra.mxu0 0
    %328 = vmatprep.subr.bf16.mxu0 0
    %329 = vmatpush1.bf16.msra.mxu0 0
    %330 = vmatprep.subr.bf16.mxu0 0
    %331 = vmatpush1.bf16.msra.mxu0 0
    %332 = vmatprep.subr.bf16.mxu0 0
    %333 = vmatpush1.bf16.msra.mxu0 0
    %334 = vmatprep.subr.bf16.mxu0 0
    %335 = vmatpush1.bf16.msra.mxu0 0
    %336 = vmatprep.subr.bf16.mxu0 0
    %337 = vmatpush1.bf16.msra.mxu0 0
    %338 = vmatprep.subr.bf16.mxu0 0
    %339 = vmatpush1.bf16.msra.mxu0 0
    %340 = vmatprep.subr.bf16.mxu0 0
    %341 = vmatpush1.bf16.msra.mxu0 0
    %342 = vmatprep.mubr.bf16.mxu0 0
    %343 = vmatmul.mubr.bf16.gmra.mrb[0].mxu0 %v245
    %v344 = vpop.f32.mrb[0].mxu0
    %v345 = vadd.f32 0.0, %v344
    %v346 = vpop.f32.mrb[0].mxu0
    %v347 = vpop.f32.mrb[0].mxu0
    %v348 = vpop.f32.mrb[0].mxu0
    %349 = vdwg.mxu0
    %v350 = vld [vmem:[%s5 + $0x4] sm:$0x1]
    %v351 = vld [vmem:[%s5 + $0x5] sm:$0x1]
    %v352 = vsel %vm80, %v345, 0.0
    %v353 = vrot.slane %v352, 4
    %v354 = vadd.f32 %v352, %v353
    %v355 = vrot.slane %v354, 2
    %v356 = vadd.f32 %v354, %v355
    %v357 = vrot.slane %v356, 1
    %v358 = vadd.f32 %v356, %v357
    %v359 = vmul.f32 %v345, %v345
    %v360 = vsel %vm80, %v359, 0.0
    %v361 = vrot.slane %v360, 4
    %v362 = vadd.f32 %v360, %v361
    %v363 = vrot.slane %v362, 2
    %v364 = vadd.f32 %v362, %v363
    %v365 = vrot.slane %v364, 1
    %v366 = vadd.f32 %v364, %v365
    %v367 = vmul.f32 %v358, 0.125
    %v368 = vmul.f32 %v366, 0.125
    %v369 = vmul.f32 %v367, %v367
    %v370 = vsub.f32 %v368, %v369
    %v371 = vmax.f32 %v370, 0.0
    %v372 = vadd.f32 %v371, 1e-05
    %v373 = vrsqrt.pop %v372
    %v374 = vmul.f32 %v350, %v373
    %v375 = vmul.f32 %v367, %v374
    %v376 = vsub.f32 %v351, %v375
    %v377 = vpack.c.bf16 %v345, %v345
    %v378 = vpack.c.bf16 %v374, %v374
    %v380 = vpack.i.b16 %v378, %v378
    %v382 = vlaneseq
    %v383 = vshrl.u32 %v382, 7
    %v384 = vsub.s32 0, %v383
    %v385 = vrot.slane %v380, %v384
    %v386 = vmul.bf16 %v377, %v385
    %v387 = vpack.c.bf16 %v376, %v376
    %v389 = vpack.i.b16 %v387, %v387
    %v391 = vlaneseq
    %v392 = vshrl.u32 %v391, 7
    %v393 = vsub.s32 0, %v392
    %v394 = vrot.slane %v389, %v393
    %v395 = vadd.bf16 %v386, %v394
    %v396 = vmax.bf16 %v395, 0
    %v397 = vld [vmem:[%s4] sm:$0xf]
    %v398 = vld [vmem:[%s4 + $0x4] sm:$0xf]
    %v399 = vld [vmem:[%s4 + $0x8] sm:$0xf]
    %v400 = vld [vmem:[%s4 + $0xc] sm:$0xf]
    %v401 = vld [vmem:[%s4 + $0x10] sm:$0xf]
    %v402 = vld [vmem:[%s4 + $0x14] sm:$0xf]
    %v403 = vld [vmem:[%s4 + $0x18] sm:$0xf]
    %v404 = vld [vmem:[%s4 + $0x1c] sm:$0xf]
    %v413 = vunpack.c.l.b16 %v397
    %v414 = vunpack.c.l.b16 %v398
    %v415 = vunpack.c.l.b16 %v399
    %v416 = vunpack.c.l.b16 %v400
    %v417 = vunpack.c.l.b16 %v401
    %v418 = vunpack.c.l.b16 %v402
    %v419 = vunpack.c.l.b16 %v403
    %v420 = vunpack.c.l.b16 %v404
    %v421 = vpack.c.b16 %v414, %v413
    %v422 = vpack.c.b16 %v416, %v415
    %v423 = vpack.c.b16 %v418, %v417
    %v424 = vpack.c.b16 %v420, %v419
    %v430 = vsel %vm80, %v396, 0
    %432 = vmatprep.subr.bf16.mxu0 0
    %433 = vmatpush1.bf16.msra.mxu0 %v421
    %434 = vmatprep.subr.bf16.mxu0 0
    %435 = vmatpush1.bf16.msra.mxu0 %v422
    %436 = vmatprep.subr.bf16.mxu0 0
    %437 = vmatpush1.bf16.msra.mxu0 %v423
    %438 = vmatprep.subr.bf16.mxu0 0
    %439 = vmatpush1.bf16.msra.mxu0 %v424
    %440 = vmatprep.subr.bf16.mxu0 0
    %441 = vmatpush1.bf16.msra.mxu0 0
    %442 = vmatprep.subr.bf16.mxu0 0
    %443 = vmatpush1.bf16.msra.mxu0 0
    %444 = vmatprep.subr.bf16.mxu0 0
    %445 = vmatpush1.bf16.msra.mxu0 0
    %446 = vmatprep.subr.bf16.mxu0 0
    %447 = vmatpush1.bf16.msra.mxu0 0
    %448 = vmatprep.subr.bf16.mxu0 0
    %449 = vmatpush1.bf16.msra.mxu0 0
    %450 = vmatprep.subr.bf16.mxu0 0
    %451 = vmatpush1.bf16.msra.mxu0 0
    %452 = vmatprep.subr.bf16.mxu0 0
    %453 = vmatpush1.bf16.msra.mxu0 0
    %454 = vmatprep.subr.bf16.mxu0 0
    %455 = vmatpush1.bf16.msra.mxu0 0
    %456 = vmatprep.subr.bf16.mxu0 0
    %457 = vmatpush1.bf16.msra.mxu0 0
    %458 = vmatprep.subr.bf16.mxu0 0
    %459 = vmatpush1.bf16.msra.mxu0 0
    %460 = vmatprep.subr.bf16.mxu0 0
    %461 = vmatpush1.bf16.msra.mxu0 0
    %462 = vmatprep.subr.bf16.mxu0 0
    %463 = vmatpush1.bf16.msra.mxu0 0
    %464 = vmatprep.mubr.bf16.mxu0 0
    %465 = vmatmul.mubr.bf16.gmra.mrb[0].mxu0 %v430
    %v466 = vpop.f32.mrb[0].mxu0
    %v467 = vadd.f32 0.0, %v466
    %v468 = vpop.f32.mrb[0].mxu0
    %v469 = vpop.f32.mrb[0].mxu0
    %v470 = vpop.f32.mrb[0].mxu0
    %471 = vdwg.mxu0
    %v472 = vld [vmem:[%s5 + $0x6] sm:$0x1]
    %v473 = vld [vmem:[%s5 + $0x7] sm:$0x1]
    %vm474 = vcmask 261120
    %v475 = vsel %vm474, %v467, 0.0
    %v476 = vrot.slane %v475, 4
    %v477 = vadd.f32 %v475, %v476
    %v478 = vrot.slane %v477, 2
    %v479 = vadd.f32 %v477, %v478
    %v480 = vrot.slane %v479, 1
    %v481 = vadd.f32 %v479, %v480
    %v482 = vmul.f32 %v467, %v467
    %v483 = vsel %vm474, %v482, 0.0
    %v484 = vrot.slane %v483, 4
    %v485 = vadd.f32 %v483, %v484
    %v486 = vrot.slane %v485, 2
    %v487 = vadd.f32 %v485, %v486
    %v488 = vrot.slane %v487, 1
    %v489 = vadd.f32 %v487, %v488
    %v490 = vmul.f32 %v481, 0.125
    %v491 = vmul.f32 %v489, 0.125
    %v492 = vmul.f32 %v490, %v490
    %v493 = vsub.f32 %v491, %v492
    %v494 = vmax.f32 %v493, 0.0
    %v495 = vadd.f32 %v494, 1e-05
    %v496 = vrsqrt.pop %v495
    %v497 = vmul.f32 %v472, %v496
    %v498 = vmul.f32 %v490, %v497
    %v499 = vsub.f32 %v473, %v498
    %v500 = vpack.c.bf16 %v467, %v467
    %v501 = vpack.c.bf16 %v497, %v497
    %v503 = vpack.i.b16 %v501, %v501
    %v505 = vlaneseq
    %v506 = vshrl.u32 %v505, 7
    %v507 = vsub.s32 0, %v506
    %v508 = vrot.slane %v503, %v507
    %v509 = vmul.bf16 %v500, %v508
    %v510 = vpack.c.bf16 %v499, %v499
    %v512 = vpack.i.b16 %v510, %v510
    %v514 = vlaneseq
    %v515 = vshrl.u32 %v514, 7
    %v516 = vsub.s32 0, %v515
    %v517 = vrot.slane %v512, %v516
    %v518 = vadd.bf16 %v509, %v517
    %v519 = vmax.bf16 %v518, 0
    %v520 = vld [vmem:[%s5 + $0x8] sm:$0x1]
    %v521 = vpack.c.bf16 %v520, %v520
    %v522 = vld [vmem:[%s5 + $0x9] sm:$0x1]
    %524 = vset.pattern.permute.xlu0 0
    %525 = vperm.xlu0 %524, %v522
    %v526 = vpop.permute.xlu0 %525
    %v529 = vsel %vm474, %v521, 0
    %v532 = vsel %vm474, %v519, 0
    %534 = vmatprep.subr.bf16.mxu0 0
    %535 = vmatpush1.bf16.xpose.msra.mxu0 %v532
    %536 = vmatprep.subr.bf16.mxu0 0
    %537 = vmatpush1.bf16.xpose.msra.mxu0 0
    %538 = vmatprep.subr.bf16.mxu0 0
    %539 = vmatpush1.bf16.xpose.msra.mxu0 0
    %540 = vmatprep.subr.bf16.mxu0 0
    %541 = vmatpush1.bf16.xpose.msra.mxu0 0
    %542 = vmatprep.subr.bf16.mxu0 0
    %543 = vmatpush1.bf16.xpose.msra.mxu0 0
    %544 = vmatprep.subr.bf16.mxu0 0
    %545 = vmatpush1.bf16.xpose.msra.mxu0 0
    %546 = vmatprep.subr.bf16.mxu0 0
    %547 = vmatpush1.bf16.xpose.msra.mxu0 0
    %548 = vmatprep.subr.bf16.mxu0 0
    %549 = vmatpush1.bf16.xpose.msra.mxu0 0
    %550 = vmatprep.subr.bf16.mxu0 0
    %551 = vmatpush1.bf16.xpose.msra.mxu0 0
    %552 = vmatprep.subr.bf16.mxu0 0
    %553 = vmatpush1.bf16.xpose.msra.mxu0 0
    %554 = vmatprep.subr.bf16.mxu0 0
    %555 = vmatpush1.bf16.xpose.msra.mxu0 0
    %556 = vmatprep.subr.bf16.mxu0 0
    %557 = vmatpush1.bf16.xpose.msra.mxu0 0
    %558 = vmatprep.subr.bf16.mxu0 0
    %559 = vmatpush1.bf16.xpose.msra.mxu0 0
    %560 = vmatprep.subr.bf16.mxu0 0
    %561 = vmatpush1.bf16.xpose.msra.mxu0 0
    %562 = vmatprep.subr.bf16.mxu0 0
    %563 = vmatpush1.bf16.xpose.msra.mxu0 0
    %564 = vmatprep.subr.bf16.mxu0 0
    %565 = vmatpush1.bf16.xpose.msra.mxu0 0
    %566 = vmatprep.mubr.bf16.mxu0 0
    %567 = vmatmul.mubr.bf16.gmra.mrb[0].mxu0 %v529
    %v568 = vpop.f32.mrb[0].mxu0
    %v569 = vadd.f32 %v526, %v568
    %v570 = vpop.f32.mrb[0].mxu0
    %v571 = vpop.f32.mrb[0].mxu0
    %v572 = vpop.f32.mrb[0].mxu0
    %573 = vdwg.mxu0
    %v574 = vmax.f32 %v569, 0.0
    %vm575 = vcmask 57344
    %576 = vst.msk [vmem:[#allocation2] sm:$0x1] %vm575, %v574
    // Predicated region
    $region26: #{tpu_custom_call.1} parent=1 // pred_check
      _
    $region27: #{tpu_custom_call.1} parent=1 // pred_check_branch
      %578 = sbr.rel (0) target = $region29
    $region28: #{tpu_custom_call.1} parent=1 // pred_region
      %s580 = ssub.s32 16, 16
      %581 = vsyncadd [#allocation3], %s580
      %s583 = sshll.u32 [#allocation2], 4
      %s584 = int_to_ptr.vmem [resolvable:$true] %s583
      %586 = dma.vmem_to_hbm [thread:$0]  %s584, 16, %s6, [#allocation3]
    $region29: #{tpu_custom_call.1} parent=1 // pred_fallthru
      _
    // Predicated region
    $region30: #{tpu_custom_call.1} parent=1 // pred_check
      _
    $region31: #{tpu_custom_call.1} parent=1 // pred_check_branch
      %588 = sbr.rel (0) target = $region33
    $region32: #{tpu_custom_call.1} parent=1 // pred_region
      %589 = dma.done [#allocation3], 16
    $region33: #{tpu_custom_call.1} parent=1 // pred_fallthru
      _
    %590 = vsyncpa [#allocation3], 1

</llo_original>
